<compile_context>
chip_gen: v6e
topology: v6e:2x2x1
jax: 0.10.0
libtpu: 0.0.40
codegen_flags: <defaults>
</compile_context>

<pallas_src>
import functools

import jax
import jax.numpy as jnp
import numpy as np
from jax.experimental import pallas as pl
from jax.experimental.pallas import tpu as pltpu

BN_EPS = 1e-5
_VMEM_LIMIT = 48 * 1024 * 1024  # safe on v5e/v6e (128 MiB) and v7x (64 MiB)


def _round_up(x, m):
    return (x + m - 1) // m * m


# ----------------------------------------------------------------------------
# Pallas kernels
# ----------------------------------------------------------------------------
def _conv1_kernel(x_ref, w_ref, s_ref, b_ref, o_ref):
    """relu((x @ w) * scale + bias) with bf16 MXU operands, f32 accumulate."""
    acc = jnp.dot(x_ref[...].astype(jnp.bfloat16), w_ref[...],
                  preferred_element_type=jnp.float32)
    o_ref[...] = jnp.maximum(acc * s_ref[...] + b_ref[...], 0.0)


def _conv2_se_kernel(ph_ref, w2_ref, s2_ref, b2_ref,
                     wse1_ref, bse1_ref, wse2_ref, bse2_ref, o_ref,
                     *, stride, Ho, Wo, with_se):
    """3x3 grouped conv (as 9 tap matmuls on a phase-split padded image)
    + folded BN + ReLU + fused Squeeze-and-Excitation, one batch image per
    grid step.  Nothing intermediate touches HBM."""
    Cb = w2_ref.shape[-1]
    ph_all = ph_ref[...]                               # (s*s, Hh, Wh, Cb) f32
    acc = jnp.zeros((Ho, Wo, Cb), jnp.float32)
    for kh in range(3):
        for kw in range(3):
            p = (kh % stride) * stride + (kw % stride)
            h0 = kh // stride
            w0 = kw // stride
            patch = ph_all[p, h0:h0 + Ho, w0:w0 + Wo, :].astype(jnp.bfloat16)
            tap = jnp.broadcast_to(w2_ref[kh * 3 + kw], (Ho, Cb, Cb))
            acc = acc + jnp.einsum("hwc,hcd->hwd", patch, tap,
                                   preferred_element_type=jnp.float32)
    out = jnp.maximum(acc * s2_ref[...] + b2_ref[...], 0.0)   # (Ho, Wo, Cb)

    if with_se:
        # whole image of this batch element is resident -> pool is exact here
        pooled = jnp.mean(out, axis=(0, 1), keepdims=True).reshape(1, Cb)
        h = jnp.dot(pooled, wse1_ref[...],
                    preferred_element_type=jnp.float32) + bse1_ref[...]
        h = jnp.maximum(h, 0.0)
        z = jnp.dot(h, wse2_ref[...],
                    preferred_element_type=jnp.float32) + bse2_ref[...]
        gate = 1.0 / (1.0 + jnp.exp(-z))                       # (1, Cb), f32
        out = out * gate.reshape(1, 1, Cb)

    o_ref[0] = out


def _conv3_proj_kernel(x_ref, xs_ref, w3_ref, s3_ref, b3_ref,
                       ws_ref, ss_ref, bs_ref, o_ref):
    """Fused: (out2 @ W3)*s3+b3  +  (xs @ Ws)*ss+bs  -> ReLU."""
    acc = jnp.dot(x_ref[...].astype(jnp.bfloat16), w3_ref[...],
                  preferred_element_type=jnp.float32)
    acc = acc * s3_ref[...] + b3_ref[...]
    sc = jnp.dot(xs_ref[...].astype(jnp.bfloat16), ws_ref[...],
                 preferred_element_type=jnp.float32)
    acc = acc + sc * ss_ref[...] + bs_ref[...]
    o_ref[...] = jnp.maximum(acc, 0.0)


def _conv3_id_kernel(x_ref, res_ref, w3_ref, s3_ref, b3_ref, o_ref):
    """Fused: (out2 @ W3)*s3+b3 + identity residual -> ReLU."""
    acc = jnp.dot(x_ref[...].astype(jnp.bfloat16), w3_ref[...],
                  preferred_element_type=jnp.float32)
    o_ref[...] = jnp.maximum(acc * s3_ref[...] + b3_ref[...] + res_ref[...], 0.0)


# ----------------------------------------------------------------------------
# Pallas wrappers
# ----------------------------------------------------------------------------
def _rowwise_call(kernel, row_args, full_args, n_out, tile_m=512):
    """Row-tiled pallas_call: `row_args` share the M (first) dim and are tiled,
    `full_args` (weights / folded BN vectors) get full-array blocks."""
    M = row_args[0].shape[0]
    tm = int(min(tile_m, _round_up(M, 8)))
    Mp = _round_up(M, tm)
    if Mp != M:
        row_args = [jnp.pad(a, ((0, Mp - M), (0, 0))) for a in row_args]

    in_specs = []
    for a in row_args:
        in_specs.append(pl.BlockSpec((tm, a.shape[1]), lambda i: (i, 0)))
    for a in full_args:
        in_specs.append(pl.BlockSpec(a.shape, lambda i, _nd=a.ndim: (0,) * _nd))

    out = pl.pallas_call(
        kernel,
        out_shape=jax.ShapeDtypeStruct((Mp, n_out), jnp.float32),
        grid=(Mp // tm,),
        in_specs=in_specs,
        out_specs=pl.BlockSpec((tm, n_out), lambda i: (i, 0)),
        compiler_params=pltpu.CompilerParams(
            dimension_semantics=("parallel",),
            vmem_limit_bytes=_VMEM_LIMIT),
    )(*row_args, *full_args)
    return out[:M] if Mp != M else out


# ----------------------------------------------------------------------------
# Parameter init (raw, torch-like) + prep (numpy: BN folding, weight repack)
# ----------------------------------------------------------------------------
def init_block_params(key, w_in, w_out, stride, group_width, bottleneck_ratio,
                      se_ratio):
    w_b = int(round(w_out * bottleneck_ratio))
    num_groups = w_b // group_width
    w_se = int(round(w_in * se_ratio))
    keys = jax.random.split(key, 16)

    def conv(k, o, i, kh, kw):
        return jax.random.normal(k, (o, i, kh, kw), jnp.float32) * 0.1

    def bn(k, c):
        k1, k2, k3, k4 = jax.random.split(k, 4)
        gamma = jax.random.uniform(k1, (c,), jnp.float32, 0.5, 1.5)
        beta = jax.random.normal(k2, (c,), jnp.float32) * 0.1
        mean = jax.random.normal(k3, (c,), jnp.float32) * 0.1
        var = jax.random.uniform(k4, (c,), jnp.float32, 0.5, 1.5)
        return gamma, beta, mean, var

    params = dict(
        w_in=w_in, w_out=w_out, stride=stride, w_b=w_b,
        num_groups=num_groups, w_se=w_se, with_se=se_ratio > 0,
        conv1_w=conv(keys[0], w_b, w_in, 1, 1), bn1=bn(keys[1], w_b),
        conv2_w=conv(keys[2], w_b, w_b // num_groups, 3, 3), bn2=bn(keys[3], w_b),
        se1_w=conv(keys[4], w_se, w_b, 1, 1),
        se1_b=jax.random.normal(keys[5], (w_se,), jnp.float32) * 0.1,
        se2_w=conv(keys[6], w_b, w_se, 1, 1),
        se2_b=jax.random.normal(keys[7], (w_b,), jnp.float32) * 0.1,
        conv3_w=conv(keys[8], w_out, w_b, 1, 1), bn3=bn(keys[9], w_out),
        has_shortcut=(stride != 1 or w_in != w_out),
    )
    if params["has_shortcut"]:
        params["sc_w"] = conv(keys[10], w_out, w_in, 1, 1)
        params["bn_sc"] = bn(keys[11], w_out)
    return params


def _grouped_taps_dense(w_oihw, num_groups):
    """Grouped OIHW 3x3 weight -> (9, Cin, Cout) dense block-diagonal taps."""
    Cout, Cin_pg, KH, KW = w_oihw.shape
    Cin = Cin_pg * num_groups
    opg = Cout // num_groups
    taps = np.zeros((KH * KW, Cin, Cout), np.float32)
    for g in range(num_groups):
        blk = w_oihw[g * opg:(g + 1) * opg]            # (opg, Cin_pg, KH, KW)
        blk = np.transpose(blk, (2, 3, 1, 0))          # (KH, KW, Cin_pg, opg)
        taps[:, g * Cin_pg:(g + 1) * Cin_pg,
             g * opg:(g + 1) * opg] = blk.reshape(KH * KW, Cin_pg, opg)
    return taps


def prepare_block(raw):
    """One-time (numpy) BN folding + weight repacking; weights in bf16."""
    def fold(bn):
        g, b, m, v = (np.asarray(t, np.float32) for t in bn)
        sc = g / np.sqrt(v + BN_EPS)
        return sc.astype(np.float32), (b - m * sc).astype(np.float32)

    sc1, b1 = fold(raw["bn1"])
    sc2, b2 = fold(raw["bn2"])
    sc3, b3 = fold(raw["bn3"])

    prep = dict(
        stride=raw["stride"], w_b=raw["w_b"], w_out=raw["w_out"],
        with_se=raw["with_se"], has_shortcut=raw["has_shortcut"],
        w1=jnp.asarray(np.asarray(raw["conv1_w"])[:, :, 0, 0].T, jnp.bfloat16),
        s1=jnp.asarray(sc1.reshape(1, -1)),
        b1=jnp.asarray(b1.reshape(1, -1)),
        w2=jnp.asarray(_grouped_taps_dense(np.asarray(raw["conv2_w"]),
                                           raw["num_groups"]), jnp.bfloat16),
        s2=jnp.asarray(sc2.reshape(1, 1, -1)),
        b2=jnp.asarray(b2.reshape(1, 1, -1)),
        wse1=jnp.asarray(np.asarray(raw["se1_w"])[:, :, 0, 0].T, jnp.float32),
        bse1=jnp.asarray(np.asarray(raw["se1_b"]).reshape(1, -1), jnp.float32),
        wse2=jnp.asarray(np.asarray(raw["se2_w"])[:, :, 0, 0].T, jnp.float32),
        bse2=jnp.asarray(np.asarray(raw["se2_b"]).reshape(1, -1), jnp.float32),
        w3=jnp.asarray(np.asarray(raw["conv3_w"])[:, :, 0, 0].T, jnp.bfloat16),
        s3=jnp.asarray(sc3.reshape(1, -1)),
        b3=jnp.asarray(b3.reshape(1, -1)),
    )
    if raw["has_shortcut"]:
        scs, bs = fold(raw["bn_sc"])
        prep["ws"] = jnp.asarray(np.asarray(raw["sc_w"])[:, :, 0, 0].T,
                                 jnp.bfloat16)
        prep["ss"] = jnp.asarray(scs.reshape(1, -1))
        prep["bs"] = jnp.asarray(bs.reshape(1, -1))
    return prep


# ----------------------------------------------------------------------------
# Block forward (Pallas path); public I/O is NCHW, internal layout is NHWC.
# ----------------------------------------------------------------------------
def block_forward(prep, x_nchw):
    N, Cin, H, W = x_nchw.shape
    s = prep["stride"]
    w_b, w_out = prep["w_b"], prep["w_out"]
    assert s in (1, 2), "only stride 1 or 2 supported"
    if s == 2:
        assert H % 2 == 0 and W % 2 == 0

    Ho = (H + 2 - 3) // s + 1
    Wo = (W + 2 - 3) // s + 1

    x = jnp.transpose(x_nchw, (0, 2, 3, 1)).astype(jnp.float32)     # NHWC

    # --- conv1 (1x1) + bn1 + relu : row-tiled matmul ------------------------
    out1 = _rowwise_call(_conv1_kernel,
                         [x.reshape(N * H * W, Cin)],
                         [prep["w1"], prep["s1"], prep["b1"]],
                         w_b)
    out1 = out1.reshape(N, H, W, w_b)

    # --- conv2 (3x3 grouped, stride) + bn2 + relu + SE ----------------------
    # Pad + stride-phase split (space-to-depth) once in XLA; all 9 tap
    # matmuls and the SE gating happen inside one Pallas kernel per image.
    out1p = jnp.pad(out1, ((0, 0), (1, 1), (1, 1), (0, 0)))
    if s == 1:
        phases = out1p[:, None]
    else:
        phases = jnp.stack([out1p[:, a::s, b::s, :]
                            for a in range(s) for b in range(s)], axis=1)
    Hh, Wh = phases.shape[2], phases.shape[3]
    phases = phases.reshape(N * s * s, Hh, Wh, w_b)

    kernel2 = functools.partial(_conv2_se_kernel, stride=s, Ho=Ho, Wo=Wo,
                                with_se=prep["with_se"])
    out2 = pl.pallas_call(
        kernel2,
        out_shape=jax.ShapeDtypeStruct((N, Ho, Wo, w_b), jnp.float32),
        grid=(N,),
        in_specs=[
            pl.BlockSpec((s * s, Hh, Wh, w_b), lambda n: (n, 0, 0, 0)),
            pl.BlockSpec(prep["w2"].shape, lambda n: (0, 0, 0)),
            pl.BlockSpec((1, 1, w_b), lambda n: (0, 0, 0)),
            pl.BlockSpec((1, 1, w_b), lambda n: (0, 0, 0)),
            pl.BlockSpec(prep["wse1"].shape, lambda n: (0, 0)),
            pl.BlockSpec(prep["bse1"].shape, lambda n: (0, 0)),
            pl.BlockSpec(prep["wse2"].shape, lambda n: (0, 0)),
            pl.BlockSpec(prep["bse2"].shape, lambda n: (0, 0)),
        ],
        out_specs=pl.BlockSpec((1, Ho, Wo, w_b), lambda n: (n, 0, 0, 0)),
        compiler_params=pltpu.CompilerParams(
            dimension_semantics=("parallel",),
            vmem_limit_bytes=_VMEM_LIMIT),
    )(phases, prep["w2"], prep["s2"], prep["b2"],
      prep["wse1"], prep["bse1"], prep["wse2"], prep["bse2"])

    # --- conv3 (1x1) + bn3 + (fused shortcut) + relu ------------------------
    out2f = out2.reshape(N * Ho * Wo, w_b)
    if prep["has_shortcut"]:
        xs = x[:, ::s, ::s, :].reshape(N * Ho * Wo, Cin)
        out3 = _rowwise_call(_conv3_proj_kernel,
                             [out2f, xs],
                             [prep["w3"], prep["s3"], prep["b3"],
                              prep["ws"], prep["ss"], prep["bs"]],
                             w_out)
    else:
        res = x.reshape(N * Ho * Wo, Cin)         # identity: Cin == w_out, s==1
        out3 = _rowwise_call(_conv3_id_kernel,
                             [out2f, res],
                             [prep["w3"], prep["s3"], prep["b3"]],
                             w_out)

    out = out3.reshape(N, Ho, Wo, w_out)
    return jnp.transpose(out, (0, 3, 1, 2))                         # NCHW


# ----------------------------------------------------------------------------
# Pure-JAX reference (for correctness checking)
# ----------------------------------------------------------------------------
def reference_block(params, x):
    P = jax.lax.Precision.HIGHEST

    def conv(x, w, stride=1, groups=1, padding=((0, 0), (0, 0))):
        return jax.lax.conv_general_dilated(
            x, w, (stride, stride), padding,
            dimension_numbers=("NCHW", "OIHW", "NCHW"),
            feature_group_count=groups, precision=P)

    def bn(x, p):
        g, b, m, v = p
        inv = g / jnp.sqrt(v + BN_EPS)
        return (x - m[None, :, None, None]) * inv[None, :, None, None] \
            + b[None, :, None, None]

    out = jax.nn.relu(bn(conv(x, params["conv1_w"]), params["bn1"]))
    out = jax.nn.relu(bn(conv(out, params["conv2_w"], stride=params["stride"],
                              groups=params["num_groups"],
                              padding=((1, 1), (1, 1))),
                         params["bn2"]))
    if params["with_se"]:
        pooled = jnp.mean(out, axis=(2, 3), keepdims=True)
        h = jax.nn.relu(conv(pooled, params["se1_w"])
                        + params["se1_b"][None, :, None, None])
        g = jax.nn.sigmoid(conv(h, params["se2_w"])
                           + params["se2_b"][None, :, None, None])
        out = out * g
    out = bn(conv(out, params["conv3_w"]), params["bn3"])
    if params["has_shortcut"]:
        sc = bn(conv(x, params["sc_w"], stride=params["stride"]),
                params["bn_sc"])
    else:
        sc = x
    return jax.nn.relu(out + sc)


# ----------------------------------------------------------------------------
if __name__ == "__main__":
    key = jax.random.PRNGKey(0)
    kx1, kp1, kx2, kp2 = jax.random.split(key, 4)

    # Config 1: stride-2 block with projection shortcut (SE enabled).
    raw1 = init_block_params(kp1, w_in=8, w_out=16, stride=2, group_width=8,
                             bottleneck_ratio=1.0, se_ratio=0.25)
    prep1 = prepare_block(raw1)
    x1 = jax.random.normal(kx1, (2, 8, 16, 16), jnp.float32)        # NCHW
    y1 = jax.block_until_ready(block_forward(prep1, x1))
    r1 = reference_block(raw1, x1)
    np.testing.assert_allclose(np.asarray(y1), np.asarray(r1),
                               atol=5e-2, rtol=5e-2)

    # Config 2: stride-1 block with identity shortcut (SE enabled).
    raw2 = init_block_params(kp2, w_in=16, w_out=16, stride=1, group_width=8,
                             bottleneck_ratio=1.0, se_ratio=0.25)
    prep2 = prepare_block(raw2)
    x2 = jax.random.normal(kx2, (2, 16, 8, 8), jnp.float32)         # NCHW
    y2 = jax.block_until_ready(block_forward(prep2, x2))
    r2 = reference_block(raw2, x2)
    np.testing.assert_allclose(np.asarray(y2), np.asarray(r2),
                               atol=5e-2, rtol=5e-2)

    print("KERNEL_OK")
</pallas_src>

<mosaic_0001>
module attributes {stable_mosaic.version = 11 : i64} {
  func.func @_conv1_kernel(%arg0: i32, %arg1: memref<512x8xf32, #tpu.memory_space<vmem>>, %arg2: memref<8x16xbf16, #tpu.memory_space<vmem>>, %arg3: memref<1x16xf32, #tpu.memory_space<vmem>>, %arg4: memref<1x16xf32, #tpu.memory_space<vmem>>, %arg5: memref<512x16xf32, #tpu.memory_space<vmem>>) attributes {dimension_semantics = [#tpu.dimension_semantics<parallel>], iteration_bounds = array<i64: 1>, scalar_prefetch = 0 : i64, scratch_operands = 0 : i64, tpu.core_type = #tpu.core_type<tc>, window_params = [{transform_indices = @transform_0, window_bounds = array<i64: 512, 8>}, {pipeline_mode = #tpu.pipeline_mode<synchronous>, transform_indices = @transform_1, window_bounds = array<i64: 8, 16>}, {pipeline_mode = #tpu.pipeline_mode<synchronous>, transform_indices = @transform_2, window_bounds = array<i64: 1, 16>}, {pipeline_mode = #tpu.pipeline_mode<synchronous>, transform_indices = @transform_3, window_bounds = array<i64: 1, 16>}, {transform_indices = @transform_4, window_bounds = array<i64: 512, 16>}]} {
    %c0 = arith.constant 0 : index
    %c0_0 = arith.constant 0 : index
    %0 = vector.load %arg1[%c0, %c0_0] : memref<512x8xf32, #tpu.memory_space<vmem>>, vector<512x8xf32>
    %1 = arith.truncf %0 : vector<512x8xf32> to vector<512x8xbf16>
    %c0_1 = arith.constant 0 : index
    %c0_2 = arith.constant 0 : index
    %2 = vector.load %arg2[%c0_1, %c0_2] : memref<8x16xbf16, #tpu.memory_space<vmem>>, vector<8x16xbf16>
    %cst = arith.constant dense<0.000000e+00> : vector<512x16xf32>
    %3 = tpu.matmul %1, %2, %cst {dimension_numbers = #tpu.dot_dimension_numbers<[1], [0], [0], [1], [0, 0, 1, 1], [], []>} : vector<512x8xbf16>, vector<8x16xbf16>, vector<512x16xf32> -> vector<512x16xf32>
    %c0_3 = arith.constant 0 : index
    %c0_4 = arith.constant 0 : index
    %4 = vector.load %arg3[%c0_3, %c0_4] : memref<1x16xf32, #tpu.memory_space<vmem>>, vector<1x16xf32>
    %5 = vector.broadcast %4 : vector<1x16xf32> to vector<512x16xf32>
    %6 = arith.mulf %3, %5 : vector<512x16xf32>
    %c0_5 = arith.constant 0 : index
    %c0_6 = arith.constant 0 : index
    %7 = vector.load %arg4[%c0_5, %c0_6] : memref<1x16xf32, #tpu.memory_space<vmem>>, vector<1x16xf32>
    %8 = vector.broadcast %7 : vector<1x16xf32> to vector<512x16xf32>
    %9 = arith.addf %6, %8 : vector<512x16xf32>
    %cst_7 = arith.constant 0.000000e+00 : f32
    %10 = vector.broadcast %cst_7 : f32 to vector<512x16xf32>
    %11 = arith.maximumf %9, %10 : vector<512x16xf32>
    %c0_8 = arith.constant 0 : index
    %c0_9 = arith.constant 0 : index
    %12 = vector.load %arg5[%c0_8, %c0_9] : memref<512x16xf32, #tpu.memory_space<vmem>>, vector<512x16xf32>
    tpu.vector_store %arg5[%c0_8, %c0_9], %11 {strides = array<i32>} : memref<512x16xf32, #tpu.memory_space<vmem>>, vector<512x16xf32>,
    return
  }
  func.func @transform_0(%arg0: i32) -> (i32, i32) {
    %c0_i32 = arith.constant 0 : i32
    %c0_i32_0 = arith.constant 0 : i32
    return %arg0, %c0_i32 : i32, i32
  }
  func.func @transform_1(%arg0: i32) -> (i32, i32) {
    %c0_i32 = arith.constant 0 : i32
    %c0_i32_0 = arith.constant 0 : i32
    %c0_i32_1 = arith.constant 0 : i32
    return %c0_i32, %c0_i32_0 : i32, i32
  }
  func.func @transform_2(%arg0: i32) -> (i32, i32) {
    %c0_i32 = arith.constant 0 : i32
    %c0_i32_0 = arith.constant 0 : i32
    %c0_i32_1 = arith.constant 0 : i32
    return %c0_i32, %c0_i32_0 : i32, i32
  }
  func.func @transform_3(%arg0: i32) -> (i32, i32) {
    %c0_i32 = arith.constant 0 : i32
    %c0_i32_0 = arith.constant 0 : i32
    %c0_i32_1 = arith.constant 0 : i32
    return %c0_i32, %c0_i32_0 : i32, i32
  }
  func.func @transform_4(%arg0: i32) -> (i32, i32) {
    %c0_i32 = arith.constant 0 : i32
    %c0_i32_0 = arith.constant 0 : i32
    return %arg0, %c0_i32 : i32, i32
  }
}

</mosaic_0001>

<llo_original>
// kernel: tpu_custom_call.1
$region0: #{tpu_custom_call.1}
  #allocation0 [shape = 'u32[]', space=smem, size = 0x4, offset = 0x4, fixed_abs, tag = 'smem constant byte address 0x4 - core index']
  #allocation1 [shape = 'u32[144,128]{1,0:T(1,128)}', space=vmem, size = 0x12000, scoped, tag = 'internal scratch']
  %s0 = inlined_call_operand.vmem [shape: f32[512,8], index: 0, kind: input, shape index: {}]
  %s1 = inlined_call_operand.vmem [shape: bf16[8,16], index: 1, kind: input, shape index: {}]
  %s2 = inlined_call_operand.vmem [shape: f32[1,16], index: 2, kind: input, shape index: {}]
  %s3 = inlined_call_operand.vmem [shape: f32[1,16], index: 3, kind: input, shape index: {}]
  %s4 = inlined_call_operand.vmem [shape: f32[512,16], index: 4, kind: output, shape index: {}]
  %s5 = sld [smem:[#allocation0]]
  $region26: #{tpu_custom_call.1} parent=0
    _
  %s7 = ssub.s32 1, %s5
  %s8 = scalar_select 0, %s7, %s5
  // Predicated region
  $region2: #{tpu_custom_call.1} parent=0 // pred_check
    _
  $region3: #{tpu_custom_call.1} parent=0 // pred_check_branch
    %10 = sbr.rel (0) target = $region5
  $region4: #{tpu_custom_call.1} parent=0 // pred_region
    _
  $region5: #{tpu_custom_call.1} parent=0 // pred_fallthru
    _
  // Predicated region
  $region6: #{tpu_custom_call.1} parent=0 // pred_check
    _
  $region7: #{tpu_custom_call.1} parent=0 // pred_check_branch
    %12 = sbr.rel (0) target = $region9
  $region8: #{tpu_custom_call.1} parent=0 // pred_region
    _
  $region9: #{tpu_custom_call.1} parent=0 // pred_fallthru
    _
  // Predicated region
  $region10: #{tpu_custom_call.1} parent=0 // pred_check
    _
  $region11: #{tpu_custom_call.1} parent=0 // pred_check_branch
    %14 = sbr.rel (0) target = $region13
  $region12: #{tpu_custom_call.1} parent=0 // pred_region
    _
  $region13: #{tpu_custom_call.1} parent=0 // pred_fallthru
    _
  // Predicated region
  $region14: #{tpu_custom_call.1} parent=0 // pred_check
    _
  $region15: #{tpu_custom_call.1} parent=0 // pred_check_branch
    %16 = sbr.rel (0) target = $region17
  $region16: #{tpu_custom_call.1} parent=0 // pred_region
    _
  $region17: #{tpu_custom_call.1} parent=0 // pred_fallthru
    _
  %v18 = vld [vmem:[%s0] sm:$0xff]
  %v19 = vld [vmem:[%s0 + $0x8] sm:$0xff]
  %v20 = vld [vmem:[%s0 + $0x10] sm:$0xff]
  %v21 = vld [vmem:[%s0 + $0x18] sm:$0xff]
  %v22 = vld [vmem:[%s0 + $0x20] sm:$0xff]
  %v23 = vld [vmem:[%s0 + $0x28] sm:$0xff]
  %v24 = vld [vmem:[%s0 + $0x30] sm:$0xff]
  %v25 = vld [vmem:[%s0 + $0x38] sm:$0xff]
  %v26 = vld [vmem:[%s0 + $0x40] sm:$0xff]
  %v27 = vld [vmem:[%s0 + $0x48] sm:$0xff]
  %v28 = vld [vmem:[%s0 + $0x50] sm:$0xff]
  %v29 = vld [vmem:[%s0 + $0x58] sm:$0xff]
  %v30 = vld [vmem:[%s0 + $0x60] sm:$0xff]
  %v31 = vld [vmem:[%s0 + $0x68] sm:$0xff]
  %v32 = vld [vmem:[%s0 + $0x70] sm:$0xff]
  %v33 = vld [vmem:[%s0 + $0x78] sm:$0xff]
  %v34 = vld [vmem:[%s0 + $0x80] sm:$0xff]
  %v35 = vld [vmem:[%s0 + $0x88] sm:$0xff]
  %v36 = vld [vmem:[%s0 + $0x90] sm:$0xff]
  %v37 = vld [vmem:[%s0 + $0x98] sm:$0xff]
  %v38 = vld [vmem:[%s0 + $0xa0] sm:$0xff]
  %v39 = vld [vmem:[%s0 + $0xa8] sm:$0xff]
  %v40 = vld [vmem:[%s0 + $0xb0] sm:$0xff]
  %v41 = vld [vmem:[%s0 + $0xb8] sm:$0xff]
  %v42 = vld [vmem:[%s0 + $0xc0] sm:$0xff]
  %v43 = vld [vmem:[%s0 + $0xc8] sm:$0xff]
  %v44 = vld [vmem:[%s0 + $0xd0] sm:$0xff]
  %v45 = vld [vmem:[%s0 + $0xd8] sm:$0xff]
  %v46 = vld [vmem:[%s0 + $0xe0] sm:$0xff]
  %v47 = vld [vmem:[%s0 + $0xe8] sm:$0xff]
  %v48 = vld [vmem:[%s0 + $0xf0] sm:$0xff]
  %v49 = vld [vmem:[%s0 + $0xf8] sm:$0xff]
  %v50 = vld [vmem:[%s0 + $0x100] sm:$0xff]
  %v51 = vld [vmem:[%s0 + $0x108] sm:$0xff]
  %v52 = vld [vmem:[%s0 + $0x110] sm:$0xff]
  %v53 = vld [vmem:[%s0 + $0x118] sm:$0xff]
  %v54 = vld [vmem:[%s0 + $0x120] sm:$0xff]
  %v55 = vld [vmem:[%s0 + $0x128] sm:$0xff]
  %v56 = vld [vmem:[%s0 + $0x130] sm:$0xff]
  %v57 = vld [vmem:[%s0 + $0x138] sm:$0xff]
  %v58 = vld [vmem:[%s0 + $0x140] sm:$0xff]
  %v59 = vld [vmem:[%s0 + $0x148] sm:$0xff]
  %v60 = vld [vmem:[%s0 + $0x150] sm:$0xff]
  %v61 = vld [vmem:[%s0 + $0x158] sm:$0xff]
  %v62 = vld [vmem:[%s0 + $0x160] sm:$0xff]
  %v63 = vld [vmem:[%s0 + $0x168] sm:$0xff]
  %v64 = vld [vmem:[%s0 + $0x170] sm:$0xff]
  %v65 = vld [vmem:[%s0 + $0x178] sm:$0xff]
  %v66 = vld [vmem:[%s0 + $0x180] sm:$0xff]
  %v67 = vld [vmem:[%s0 + $0x188] sm:$0xff]
  %v68 = vld [vmem:[%s0 + $0x190] sm:$0xff]
  %v69 = vld [vmem:[%s0 + $0x198] sm:$0xff]
  %v70 = vld [vmem:[%s0 + $0x1a0] sm:$0xff]
  %v71 = vld [vmem:[%s0 + $0x1a8] sm:$0xff]
  %v72 = vld [vmem:[%s0 + $0x1b0] sm:$0xff]
  %v73 = vld [vmem:[%s0 + $0x1b8] sm:$0xff]
  %v74 = vld [vmem:[%s0 + $0x1c0] sm:$0xff]
  %v75 = vld [vmem:[%s0 + $0x1c8] sm:$0xff]
  %v76 = vld [vmem:[%s0 + $0x1d0] sm:$0xff]
  %v77 = vld [vmem:[%s0 + $0x1d8] sm:$0xff]
  %v78 = vld [vmem:[%s0 + $0x1e0] sm:$0xff]
  %v79 = vld [vmem:[%s0 + $0x1e8] sm:$0xff]
  %v80 = vld [vmem:[%s0 + $0x1f0] sm:$0xff]
  %v81 = vld [vmem:[%s0 + $0x1f8] sm:$0xff]
  %v82 = vpack.c.bf16 %v19, %v18
  %v83 = vpack.c.bf16 %v21, %v20
  %v84 = vpack.c.bf16 %v23, %v22
  %v85 = vpack.c.bf16 %v25, %v24
  %v86 = vpack.c.bf16 %v27, %v26
  %v87 = vpack.c.bf16 %v29, %v28
  %v88 = vpack.c.bf16 %v31, %v30
  %v89 = vpack.c.bf16 %v33, %v32
  %v90 = vpack.c.bf16 %v35, %v34
  %v91 = vpack.c.bf16 %v37, %v36
  %v92 = vpack.c.bf16 %v39, %v38
  %v93 = vpack.c.bf16 %v41, %v40
  %v94 = vpack.c.bf16 %v43, %v42
  %v95 = vpack.c.bf16 %v45, %v44
  %v96 = vpack.c.bf16 %v47, %v46
  %v97 = vpack.c.bf16 %v49, %v48
  %v98 = vpack.c.bf16 %v51, %v50
  %v99 = vpack.c.bf16 %v53, %v52
  %v100 = vpack.c.bf16 %v55, %v54
  %v101 = vpack.c.bf16 %v57, %v56
  %v102 = vpack.c.bf16 %v59, %v58
  %v103 = vpack.c.bf16 %v61, %v60
  %v104 = vpack.c.bf16 %v63, %v62
  %v105 = vpack.c.bf16 %v65, %v64
  %v106 = vpack.c.bf16 %v67, %v66
  %v107 = vpack.c.bf16 %v69, %v68
  %v108 = vpack.c.bf16 %v71, %v70
  %v109 = vpack.c.bf16 %v73, %v72
  %v110 = vpack.c.bf16 %v75, %v74
  %v111 = vpack.c.bf16 %v77, %v76
  %v112 = vpack.c.bf16 %v79, %v78
  %v113 = vpack.c.bf16 %v81, %v80
  %v114 = vld [vmem:[%s1] sm:$0xf]
  %vm115 = vcmask 64512
  %v117 = vsel %vm115, %v82, 0
  %v120 = vsel %vm115, %v83, 0
  %v123 = vsel %vm115, %v84, 0
  %v126 = vsel %vm115, %v85, 0
  %v129 = vsel %vm115, %v86, 0
  %v132 = vsel %vm115, %v87, 0
  %v135 = vsel %vm115, %v88, 0
  %v138 = vsel %vm115, %v89, 0
  %v141 = vsel %vm115, %v90, 0
  %v144 = vsel %vm115, %v91, 0
  %v147 = vsel %vm115, %v92, 0
  %v150 = vsel %vm115, %v93, 0
  %v153 = vsel %vm115, %v94, 0
  %v156 = vsel %vm115, %v95, 0
  %v159 = vsel %vm115, %v96, 0
  %v162 = vsel %vm115, %v97, 0
  %v165 = vsel %vm115, %v98, 0
  %v168 = vsel %vm115, %v99, 0
  %v171 = vsel %vm115, %v100, 0
  %v174 = vsel %vm115, %v101, 0
  %v177 = vsel %vm115, %v102, 0
  %v180 = vsel %vm115, %v103, 0
  %v183 = vsel %vm115, %v104, 0
  %v186 = vsel %vm115, %v105, 0
  %v189 = vsel %vm115, %v106, 0
  %v192 = vsel %vm115, %v107, 0
  %v195 = vsel %vm115, %v108, 0
  %v198 = vsel %vm115, %v109, 0
  %v201 = vsel %vm115, %v110, 0
  %v204 = vsel %vm115, %v111, 0
  %v207 = vsel %vm115, %v112, 0
  %v210 = vsel %vm115, %v113, 0
  %vm212 = vcmask 1043456
  %v214 = vsel %vm212, %v114, 0
  %216 = vmatprep.subr.bf16.mxu0 0
  %217 = vmatpush1.bf16.msra.mxu0 0
  %218 = vmatprep.subr.bf16.mxu0 0
  %219 = vmatpush1.bf16.msra.mxu0 0
  %220 = vmatprep.subr.bf16.mxu0 0
  %221 = vmatpush1.bf16.msra.mxu0 0
  %222 = vmatprep.subr.bf16.mxu0 0
  %223 = vmatpush1.bf16.msra.mxu0 0
  %224 = vmatprep.subr.bf16.mxu0 0
  %225 = vmatpush1.bf16.msra.mxu0 0
  %226 = vmatprep.subr.bf16.mxu0 0
  %227 = vmatpush1.bf16.msra.mxu0 0
  %228 = vmatprep.subr.bf16.mxu0 0
  %229 = vmatpush1.bf16.msra.mxu0 0
  %230 = vmatprep.subr.bf16.mxu0 0
  %231 = vmatpush1.bf16.msra.mxu0 %v214
  %232 = vmatprep.subr.bf16.mxu0 0
  %233 = vmatpush2.bf16.msra.mxu0 0
  %234 = vmatprep.subr.bf16.mxu0 0
  %235 = vmatpush2.bf16.msra.mxu0 0
  %236 = vmatprep.subr.bf16.mxu0 0
  %237 = vmatpush2.bf16.msra.mxu0 0
  %238 = vmatprep.subr.bf16.mxu0 0
  %239 = vmatpush2.bf16.msra.mxu0 0
  %240 = vmatprep.subr.bf16.mxu0 0
  %241 = vmatpush2.bf16.msra.mxu0 0
  %242 = vmatprep.subr.bf16.mxu0 0
  %243 = vmatpush2.bf16.msra.mxu0 0
  %244 = vmatprep.subr.bf16.mxu0 0
  %245 = vmatpush2.bf16.msra.mxu0 0
  %246 = vmatprep.subr.bf16.mxu0 0
  %247 = vmatpush2.bf16.msra.mxu0 0
  %248 = vmatprep.mubr.bf16.mxu0 0
  %249 = vmatmul.mubr.bf16.gmra.mxu0 %v117
  %v250 = vpop.f32.mrf.mxu0
  %v251 = vadd.f32 0.0, %v250
  %v252 = vpop.f32.mrf.mxu0
  %v253 = vpop.f32.mrf.mxu0
  %v254 = vadd.f32 0.0, %v253
  %v255 = vpop.f32.mrf.mxu0
  %256 = vmatprep.mubr.bf16.mxu0 0
  %257 = vmatmul.mubr.bf16.gmra.mxu0 %v120
  %v258 = vpop.f32.mrf.mxu0
  %v259 = vadd.f32 0.0, %v258
  %v260 = vpop.f32.mrf.mxu0
  %v261 = vpop.f32.mrf.mxu0
  %v262 = vadd.f32 0.0, %v261
  %v263 = vpop.f32.mrf.mxu0
  %264 = vmatprep.mubr.bf16.mxu0 0
  %265 = vmatmul.mubr.bf16.gmra.mxu0 %v123
  %v266 = vpop.f32.mrf.mxu0
  %v267 = vadd.f32 0.0, %v266
  %v268 = vpop.f32.mrf.mxu0
  %v269 = vpop.f32.mrf.mxu0
  %v270 = vadd.f32 0.0, %v269
  %v271 = vpop.f32.mrf.mxu0
  %272 = vmatprep.mubr.bf16.mxu0 0
  %273 = vmatmul.mubr.bf16.gmra.mxu0 %v126
  %v274 = vpop.f32.mrf.mxu0
  %v275 = vadd.f32 0.0, %v274
  %v276 = vpop.f32.mrf.mxu0
  %v277 = vpop.f32.mrf.mxu0
  %v278 = vadd.f32 0.0, %v277
  %v279 = vpop.f32.mrf.mxu0
  %280 = vmatprep.mubr.bf16.mxu0 0
  %281 = vmatmul.mubr.bf16.gmra.mxu0 %v129
  %v282 = vpop.f32.mrf.mxu0
  %v283 = vadd.f32 0.0, %v282
  %v284 = vpop.f32.mrf.mxu0
  %v285 = vpop.f32.mrf.mxu0
  %v286 = vadd.f32 0.0, %v285
  %v287 = vpop.f32.mrf.mxu0
  %288 = vmatprep.mubr.bf16.mxu0 0
  %289 = vmatmul.mubr.bf16.gmra.mxu0 %v132
  %v290 = vpop.f32.mrf.mxu0
  %v291 = vadd.f32 0.0, %v290
  %v292 = vpop.f32.mrf.mxu0
  %v293 = vpop.f32.mrf.mxu0
  %v294 = vadd.f32 0.0, %v293
  %v295 = vpop.f32.mrf.mxu0
  %296 = vmatprep.mubr.bf16.mxu0 0
  %297 = vmatmul.mubr.bf16.gmra.mxu0 %v135
  %v298 = vpop.f32.mrf.mxu0
  %v299 = vadd.f32 0.0, %v298
  %v300 = vpop.f32.mrf.mxu0
  %v301 = vpop.f32.mrf.mxu0
  %v302 = vadd.f32 0.0, %v301
  %v303 = vpop.f32.mrf.mxu0
  %304 = vmatprep.mubr.bf16.mxu0 0
  %305 = vmatmul.mubr.bf16.gmra.mxu0 %v138
  %v306 = vpop.f32.mrf.mxu0
  %v307 = vadd.f32 0.0, %v306
  %v308 = vpop.f32.mrf.mxu0
  %v309 = vpop.f32.mrf.mxu0
  %v310 = vadd.f32 0.0, %v309
  %v311 = vpop.f32.mrf.mxu0
  %312 = vmatprep.mubr.bf16.mxu0 0
  %313 = vmatmul.mubr.bf16.gmra.mxu0 %v141
  %v314 = vpop.f32.mrf.mxu0
  %v315 = vadd.f32 0.0, %v314
  %v316 = vpop.f32.mrf.mxu0
  %v317 = vpop.f32.mrf.mxu0
  %v318 = vadd.f32 0.0, %v317
  %v319 = vpop.f32.mrf.mxu0
  %320 = vmatprep.mubr.bf16.mxu0 0
  %321 = vmatmul.mubr.bf16.gmra.mxu0 %v144
  %v322 = vpop.f32.mrf.mxu0
  %v323 = vadd.f32 0.0, %v322
  %v324 = vpop.f32.mrf.mxu0
  %v325 = vpop.f32.mrf.mxu0
  %v326 = vadd.f32 0.0, %v325
  %v327 = vpop.f32.mrf.mxu0
  %328 = vmatprep.mubr.bf16.mxu0 0
  %329 = vmatmul.mubr.bf16.gmra.mxu0 %v147
  %v330 = vpop.f32.mrf.mxu0
  %v331 = vadd.f32 0.0, %v330
  %v332 = vpop.f32.mrf.mxu0
  %v333 = vpop.f32.mrf.mxu0
  %v334 = vadd.f32 0.0, %v333
  %v335 = vpop.f32.mrf.mxu0
  %336 = vmatprep.mubr.bf16.mxu0 0
  %337 = vmatmul.mubr.bf16.gmra.mxu0 %v150
  %v338 = vpop.f32.mrf.mxu0
  %v339 = vadd.f32 0.0, %v338
  %v340 = vpop.f32.mrf.mxu0
  %v341 = vpop.f32.mrf.mxu0
  %v342 = vadd.f32 0.0, %v341
  %v343 = vpop.f32.mrf.mxu0
  %344 = vmatprep.mubr.bf16.mxu0 0
  %345 = vmatmul.mubr.bf16.gmra.mxu0 %v153
  %v346 = vpop.f32.mrf.mxu0
  %v347 = vadd.f32 0.0, %v346
  %v348 = vpop.f32.mrf.mxu0
  %v349 = vpop.f32.mrf.mxu0
  %v350 = vadd.f32 0.0, %v349
  %v351 = vpop.f32.mrf.mxu0
  %352 = vmatprep.mubr.bf16.mxu0 0
  %353 = vmatmul.mubr.bf16.gmra.mxu0 %v156
  %v354 = vpop.f32.mrf.mxu0
  %v355 = vadd.f32 0.0, %v354
  %v356 = vpop.f32.mrf.mxu0
  %v357 = vpop.f32.mrf.mxu0
  %v358 = vadd.f32 0.0, %v357
  %v359 = vpop.f32.mrf.mxu0
  %360 = vmatprep.mubr.bf16.mxu0 0
  %361 = vmatmul.mubr.bf16.gmra.mxu0 %v159
  %v362 = vpop.f32.mrf.mxu0
  %v363 = vadd.f32 0.0, %v362
  %v364 = vpop.f32.mrf.mxu0
  %v365 = vpop.f32.mrf.mxu0
  %v366 = vadd.f32 0.0, %v365
  %v367 = vpop.f32.mrf.mxu0
  %368 = vmatprep.mubr.bf16.mxu0 0
  %369 = vmatmul.mubr.bf16.gmra.mxu0 %v162
  %v370 = vpop.f32.mrf.mxu0
  %v371 = vadd.f32 0.0, %v370
  %v372 = vpop.f32.mrf.mxu0
  %v373 = vpop.f32.mrf.mxu0
  %v374 = vadd.f32 0.0, %v373
  %v375 = vpop.f32.mrf.mxu0
  %376 = vmatprep.mubr.bf16.mxu0 0
  %377 = vmatmul.mubr.bf16.gmra.mxu0 %v165
  %v378 = vpop.f32.mrf.mxu0
  %v379 = vadd.f32 0.0, %v378
  %v380 = vpop.f32.mrf.mxu0
  %v381 = vpop.f32.mrf.mxu0
  %v382 = vadd.f32 0.0, %v381
  %v383 = vpop.f32.mrf.mxu0
  %384 = vmatprep.mubr.bf16.mxu0 0
  %385 = vmatmul.mubr.bf16.gmra.mxu0 %v168
  %v386 = vpop.f32.mrf.mxu0
  %v387 = vadd.f32 0.0, %v386
  %v388 = vpop.f32.mrf.mxu0
  %v389 = vpop.f32.mrf.mxu0
  %v390 = vadd.f32 0.0, %v389
  %v391 = vpop.f32.mrf.mxu0
  %392 = vmatprep.mubr.bf16.mxu0 0
  %393 = vmatmul.mubr.bf16.gmra.mxu0 %v171
  %v394 = vpop.f32.mrf.mxu0
  %v395 = vadd.f32 0.0, %v394
  %v396 = vpop.f32.mrf.mxu0
  %v397 = vpop.f32.mrf.mxu0
  %v398 = vadd.f32 0.0, %v397
  %v399 = vpop.f32.mrf.mxu0
  %400 = vmatprep.mubr.bf16.mxu0 0
  %401 = vmatmul.mubr.bf16.gmra.mxu0 %v174
  %v402 = vpop.f32.mrf.mxu0
  %v403 = vadd.f32 0.0, %v402
  %v404 = vpop.f32.mrf.mxu0
  %v405 = vpop.f32.mrf.mxu0
  %v406 = vadd.f32 0.0, %v405
  %v407 = vpop.f32.mrf.mxu0
  %408 = vmatprep.mubr.bf16.mxu0 0
  %409 = vmatmul.mubr.bf16.gmra.mxu0 %v177
  %v410 = vpop.f32.mrf.mxu0
  %v411 = vadd.f32 0.0, %v410
  %v412 = vpop.f32.mrf.mxu0
  %v413 = vpop.f32.mrf.mxu0
  %v414 = vadd.f32 0.0, %v413
  %v415 = vpop.f32.mrf.mxu0
  %416 = vmatprep.mubr.bf16.mxu0 0
  %417 = vmatmul.mubr.bf16.gmra.mxu0 %v180
  %v418 = vpop.f32.mrf.mxu0
  %v419 = vadd.f32 0.0, %v418
  %v420 = vpop.f32.mrf.mxu0
  %v421 = vpop.f32.mrf.mxu0
  %v422 = vadd.f32 0.0, %v421
  %v423 = vpop.f32.mrf.mxu0
  %424 = vmatprep.mubr.bf16.mxu0 0
  %425 = vmatmul.mubr.bf16.gmra.mxu0 %v183
  %v426 = vpop.f32.mrf.mxu0
  %v427 = vadd.f32 0.0, %v426
  %v428 = vpop.f32.mrf.mxu0
  %v429 = vpop.f32.mrf.mxu0
  %v430 = vadd.f32 0.0, %v429
  %v431 = vpop.f32.mrf.mxu0
  %432 = vmatprep.mubr.bf16.mxu0 0
  %433 = vmatmul.mubr.bf16.gmra.mxu0 %v186
  %v434 = vpop.f32.mrf.mxu0
  %v435 = vadd.f32 0.0, %v434
  %v436 = vpop.f32.mrf.mxu0
  %v437 = vpop.f32.mrf.mxu0
  %v438 = vadd.f32 0.0, %v437
  %v439 = vpop.f32.mrf.mxu0
  %440 = vmatprep.mubr.bf16.mxu0 0
  %441 = vmatmul.mubr.bf16.gmra.mxu0 %v189
  %v442 = vpop.f32.mrf.mxu0
  %v443 = vadd.f32 0.0, %v442
  %v444 = vpop.f32.mrf.mxu0
  %v445 = vpop.f32.mrf.mxu0
  %v446 = vadd.f32 0.0, %v445
  %v447 = vpop.f32.mrf.mxu0
  %448 = vmatprep.mubr.bf16.mxu0 0
  %449 = vmatmul.mubr.bf16.gmra.mxu0 %v192
  %v450 = vpop.f32.mrf.mxu0
  %v451 = vadd.f32 0.0, %v450
  %v452 = vpop.f32.mrf.mxu0
  %v453 = vpop.f32.mrf.mxu0
  %v454 = vadd.f32 0.0, %v453
  %v455 = vpop.f32.mrf.mxu0
  %456 = vmatprep.mubr.bf16.mxu0 0
  %457 = vmatmul.mubr.bf16.gmra.mxu0 %v195
  %v458 = vpop.f32.mrf.mxu0
  %v459 = vadd.f32 0.0, %v458
  %v460 = vpop.f32.mrf.mxu0
  %v461 = vpop.f32.mrf.mxu0
  %v462 = vadd.f32 0.0, %v461
  %v463 = vpop.f32.mrf.mxu0
  %464 = vmatprep.mubr.bf16.mxu0 0
  %465 = vmatmul.mubr.bf16.gmra.mxu0 %v198
  %v466 = vpop.f32.mrf.mxu0
  %v467 = vadd.f32 0.0, %v466
  %v468 = vpop.f32.mrf.mxu0
  %v469 = vpop.f32.mrf.mxu0
  %v470 = vadd.f32 0.0, %v469
  %v471 = vpop.f32.mrf.mxu0
  %472 = vmatprep.mubr.bf16.mxu0 0
  %473 = vmatmul.mubr.bf16.gmra.mxu0 %v201
  %v474 = vpop.f32.mrf.mxu0
  %v475 = vadd.f32 0.0, %v474
  %v476 = vpop.f32.mrf.mxu0
  %v477 = vpop.f32.mrf.mxu0
  %v478 = vadd.f32 0.0, %v477
  %v479 = vpop.f32.mrf.mxu0
  %480 = vmatprep.mubr.bf16.mxu0 0
  %481 = vmatmul.mubr.bf16.gmra.mxu0 %v204
  %v482 = vpop.f32.mrf.mxu0
  %v483 = vadd.f32 0.0, %v482
  %v484 = vpop.f32.mrf.mxu0
  %v485 = vpop.f32.mrf.mxu0
  %v486 = vadd.f32 0.0, %v485
  %v487 = vpop.f32.mrf.mxu0
  %488 = vmatprep.mubr.bf16.mxu0 0
  %489 = vmatmul.mubr.bf16.gmra.mxu0 %v207
  %v490 = vpop.f32.mrf.mxu0
  %v491 = vadd.f32 0.0, %v490
  %v492 = vpop.f32.mrf.mxu0
  %v493 = vpop.f32.mrf.mxu0
  %v494 = vadd.f32 0.0, %v493
  %v495 = vpop.f32.mrf.mxu0
  %496 = vmatprep.mubr.bf16.mxu0 0
  %497 = vmatmul.mubr.bf16.gmra.mxu0 %v210
  %v498 = vpop.f32.mrf.mxu0
  %v499 = vadd.f32 0.0, %v498
  %v500 = vpop.f32.mrf.mxu0
  %v501 = vpop.f32.mrf.mxu0
  %v502 = vadd.f32 0.0, %v501
  %v503 = vpop.f32.mrf.mxu0
  %504 = vdwg.mxu0
  %v505 = vld [vmem:[%s2] sm:$0x1]
  %v507 = vlaneseq
  %v508 = vshrl.u32 %v507, 7
  %v509 = vsub.s32 0, %v508
  %v510 = vrot.slane %v505, %v509
  %v512 = vmul.f32 %v251, %v510
  %v513 = vmul.f32 %v254, %v510
  %v514 = vmul.f32 %v259, %v510
  %v515 = vmul.f32 %v262, %v510
  %v516 = vmul.f32 %v267, %v510
  %v517 = vmul.f32 %v270, %v510
  %v518 = vmul.f32 %v275, %v510
  %v519 = vmul.f32 %v278, %v510
  %v520 = vmul.f32 %v283, %v510
  %v521 = vmul.f32 %v286, %v510
  %v522 = vmul.f32 %v291, %v510
  %v523 = vmul.f32 %v294, %v510
  %v524 = vmul.f32 %v299, %v510
  %v525 = vmul.f32 %v302, %v510
  %v526 = vmul.f32 %v307, %v510
  %v527 = vmul.f32 %v310, %v510
  %v528 = vmul.f32 %v315, %v510
  %v529 = vmul.f32 %v318, %v510
  %v530 = vmul.f32 %v323, %v510
  %v531 = vmul.f32 %v326, %v510
  %v532 = vmul.f32 %v331, %v510
  %v533 = vmul.f32 %v334, %v510
  %v534 = vmul.f32 %v339, %v510
  %v535 = vmul.f32 %v342, %v510
  %v536 = vmul.f32 %v347, %v510
  %v537 = vmul.f32 %v350, %v510
  %v538 = vmul.f32 %v355, %v510
  %v539 = vmul.f32 %v358, %v510
  %v540 = vmul.f32 %v363, %v510
  %v541 = vmul.f32 %v366, %v510
  %v542 = vmul.f32 %v371, %v510
  %v543 = vmul.f32 %v374, %v510
  %v544 = vmul.f32 %v379, %v510
  %v545 = vmul.f32 %v382, %v510
  %v546 = vmul.f32 %v387, %v510
  %v547 = vmul.f32 %v390, %v510
  %v548 = vmul.f32 %v395, %v510
  %v549 = vmul.f32 %v398, %v510
  %v550 = vmul.f32 %v403, %v510
  %v551 = vmul.f32 %v406, %v510
  %v552 = vmul.f32 %v411, %v510
  %v553 = vmul.f32 %v414, %v510
  %v554 = vmul.f32 %v419, %v510
  %v555 = vmul.f32 %v422, %v510
  %v556 = vmul.f32 %v427, %v510
  %v557 = vmul.f32 %v430, %v510
  %v558 = vmul.f32 %v435, %v510
  %v559 = vmul.f32 %v438, %v510
  %v560 = vmul.f32 %v443, %v510
  %v561 = vmul.f32 %v446, %v510
  %v562 = vmul.f32 %v451, %v510
  %v563 = vmul.f32 %v454, %v510
  %v564 = vmul.f32 %v459, %v510
  %v565 = vmul.f32 %v462, %v510
  %v566 = vmul.f32 %v467, %v510
  %v567 = vmul.f32 %v470, %v510
  %v568 = vmul.f32 %v475, %v510
  %v569 = vmul.f32 %v478, %v510
  %v570 = vmul.f32 %v483, %v510
  %v571 = vmul.f32 %v486, %v510
  %v572 = vmul.f32 %v491, %v510
  %v573 = vmul.f32 %v494, %v510
  %v574 = vmul.f32 %v499, %v510
  %v575 = vmul.f32 %v502, %v510
  %v576 = vld [vmem:[%s3] sm:$0x1]
  %v578 = vlaneseq
  %v579 = vshrl.u32 %v578, 7
  %v580 = vsub.s32 0, %v579
  %v581 = vrot.slane %v576, %v580
  %v583 = vadd.f32 %v512, %v581
  %v584 = vadd.f32 %v513, %v581
  %v585 = vadd.f32 %v514, %v581
  %v586 = vadd.f32 %v515, %v581
  %v587 = vadd.f32 %v516, %v581
  %v588 = vadd.f32 %v517, %v581
  %v589 = vadd.f32 %v518, %v581
  %v590 = vadd.f32 %v519, %v581
  %v591 = vadd.f32 %v520, %v581
  %v592 = vadd.f32 %v521, %v581
  %v593 = vadd.f32 %v522, %v581
  %v594 = vadd.f32 %v523, %v581
  %v595 = vadd.f32 %v524, %v581
  %v596 = vadd.f32 %v525, %v581
  %v597 = vadd.f32 %v526, %v581
  %v598 = vadd.f32 %v527, %v581
  %v599 = vadd.f32 %v528, %v581
  %v600 = vadd.f32 %v529, %v581
  %v601 = vadd.f32 %v530, %v581
  %v602 = vadd.f32 %v531, %v581
  %v603 = vadd.f32 %v532, %v581
  %v604 = vadd.f32 %v533, %v581
  %v605 = vadd.f32 %v534, %v581
  %v606 = vadd.f32 %v535, %v581
  %v607 = vadd.f32 %v536, %v581
  %v608 = vadd.f32 %v537, %v581
  %v609 = vadd.f32 %v538, %v581
  %v610 = vadd.f32 %v539, %v581
  %v611 = vadd.f32 %v540, %v581
  %v612 = vadd.f32 %v541, %v581
  %v613 = vadd.f32 %v542, %v581
  %v614 = vadd.f32 %v543, %v581
  %v615 = vadd.f32 %v544, %v581
  %v616 = vadd.f32 %v545, %v581
  %v617 = vadd.f32 %v546, %v581
  %v618 = vadd.f32 %v547, %v581
  %v619 = vadd.f32 %v548, %v581
  %v620 = vadd.f32 %v549, %v581
  %v621 = vadd.f32 %v550, %v581
  %v622 = vadd.f32 %v551, %v581
  %v623 = vadd.f32 %v552, %v581
  %v624 = vadd.f32 %v553, %v581
  %v625 = vadd.f32 %v554, %v581
  %v626 = vadd.f32 %v555, %v581
  %v627 = vadd.f32 %v556, %v581
  %v628 = vadd.f32 %v557, %v581
  %v629 = vadd.f32 %v558, %v581
  %v630 = vadd.f32 %v559, %v581
  %v631 = vadd.f32 %v560, %v581
  %v632 = vadd.f32 %v561, %v581
  %v633 = vadd.f32 %v562, %v581
  %v634 = vadd.f32 %v563, %v581
  %v635 = vadd.f32 %v564, %v581
  %v636 = vadd.f32 %v565, %v581
  %v637 = vadd.f32 %v566, %v581
  %v638 = vadd.f32 %v567, %v581
  %v639 = vadd.f32 %v568, %v581
  %v640 = vadd.f32 %v569, %v581
  %v641 = vadd.f32 %v570, %v581
  %v642 = vadd.f32 %v571, %v581
  %v643 = vadd.f32 %v572, %v581
  %v644 = vadd.f32 %v573, %v581
  %v645 = vadd.f32 %v574, %v581
  %v646 = vadd.f32 %v575, %v581
  %v647 = vmax.f32 %v583, 0.0
  %v648 = vmax.f32 %v584, 0.0
  %v649 = vmax.f32 %v585, 0.0
  %v650 = vmax.f32 %v586, 0.0
  %v651 = vmax.f32 %v587, 0.0
  %v652 = vmax.f32 %v588, 0.0
  %v653 = vmax.f32 %v589, 0.0
  %v654 = vmax.f32 %v590, 0.0
  %v655 = vmax.f32 %v591, 0.0
  %v656 = vmax.f32 %v592, 0.0
  %v657 = vmax.f32 %v593, 0.0
  %v658 = vmax.f32 %v594, 0.0
  %v659 = vmax.f32 %v595, 0.0
  %v660 = vmax.f32 %v596, 0.0
  %v661 = vmax.f32 %v597, 0.0
  %v662 = vmax.f32 %v598, 0.0
  %v663 = vmax.f32 %v599, 0.0
  %v664 = vmax.f32 %v600, 0.0
  %v665 = vmax.f32 %v601, 0.0
  %v666 = vmax.f32 %v602, 0.0
  %v667 = vmax.f32 %v603, 0.0
  %v668 = vmax.f32 %v604, 0.0
  %v669 = vmax.f32 %v605, 0.0
  %v670 = vmax.f32 %v606, 0.0
  %v671 = vmax.f32 %v607, 0.0
  %v672 = vmax.f32 %v608, 0.0
  %v673 = vmax.f32 %v609, 0.0
  %v674 = vmax.f32 %v610, 0.0
  %v675 = vmax.f32 %v611, 0.0
  %v676 = vmax.f32 %v612, 0.0
  %v677 = vmax.f32 %v613, 0.0
  %v678 = vmax.f32 %v614, 0.0
  %v679 = vmax.f32 %v615, 0.0
  %v680 = vmax.f32 %v616, 0.0
  %v681 = vmax.f32 %v617, 0.0
  %v682 = vmax.f32 %v618, 0.0
  %v683 = vmax.f32 %v619, 0.0
  %v684 = vmax.f32 %v620, 0.0
  %v685 = vmax.f32 %v621, 0.0
  %v686 = vmax.f32 %v622, 0.0
  %v687 = vmax.f32 %v623, 0.0
  %v688 = vmax.f32 %v624, 0.0
  %v689 = vmax.f32 %v625, 0.0
  %v690 = vmax.f32 %v626, 0.0
  %v691 = vmax.f32 %v627, 0.0
  %v692 = vmax.f32 %v628, 0.0
  %v693 = vmax.f32 %v629, 0.0
  %v694 = vmax.f32 %v630, 0.0
  %v695 = vmax.f32 %v631, 0.0
  %v696 = vmax.f32 %v632, 0.0
  %v697 = vmax.f32 %v633, 0.0
  %v698 = vmax.f32 %v634, 0.0
  %v699 = vmax.f32 %v635, 0.0
  %v700 = vmax.f32 %v636, 0.0
  %v701 = vmax.f32 %v637, 0.0
  %v702 = vmax.f32 %v638, 0.0
  %v703 = vmax.f32 %v639, 0.0
  %v704 = vmax.f32 %v640, 0.0
  %v705 = vmax.f32 %v641, 0.0
  %v706 = vmax.f32 %v642, 0.0
  %v707 = vmax.f32 %v643, 0.0
  %v708 = vmax.f32 %v644, 0.0
  %v709 = vmax.f32 %v645, 0.0
  %v710 = vmax.f32 %v646, 0.0
  %vm711 = vcmask 130048
  %712 = vst.msk [vmem:[%s4] sm:$0xff] %vm711, %v647
  %713 = vst.msk [vmem:[%s4 + $0x8] sm:$0xff] %vm711, %v648
  %714 = vst.msk [vmem:[%s4 + $0x10] sm:$0xff] %vm711, %v649
  %715 = vst.msk [vmem:[%s4 + $0x18] sm:$0xff] %vm711, %v650
  %716 = vst.msk [vmem:[%s4 + $0x20] sm:$0xff] %vm711, %v651
  %717 = vst.msk [vmem:[%s4 + $0x28] sm:$0xff] %vm711, %v652
  %718 = vst.msk [vmem:[%s4 + $0x30] sm:$0xff] %vm711, %v653
  %719 = vst.msk [vmem:[%s4 + $0x38] sm:$0xff] %vm711, %v654
  %720 = vst.msk [vmem:[%s4 + $0x40] sm:$0xff] %vm711, %v655
  %721 = vst.msk [vmem:[%s4 + $0x48] sm:$0xff] %vm711, %v656
  %722 = vst.msk [vmem:[%s4 + $0x50] sm:$0xff] %vm711, %v657
  %723 = vst.msk [vmem:[%s4 + $0x58] sm:$0xff] %vm711, %v658
  %724 = vst.msk [vmem:[%s4 + $0x60] sm:$0xff] %vm711, %v659
  %725 = vst.msk [vmem:[%s4 + $0x68] sm:$0xff] %vm711, %v660
  %726 = vst.msk [vmem:[%s4 + $0x70] sm:$0xff] %vm711, %v661
  %727 = vst.msk [vmem:[%s4 + $0x78] sm:$0xff] %vm711, %v662
  %728 = vst.msk [vmem:[%s4 + $0x80] sm:$0xff] %vm711, %v663
  %729 = vst.msk [vmem:[%s4 + $0x88] sm:$0xff] %vm711, %v664
  %730 = vst.msk [vmem:[%s4 + $0x90] sm:$0xff] %vm711, %v665
  %731 = vst.msk [vmem:[%s4 + $0x98] sm:$0xff] %vm711, %v666
  %732 = vst.msk [vmem:[%s4 + $0xa0] sm:$0xff] %vm711, %v667
  %733 = vst.msk [vmem:[%s4 + $0xa8] sm:$0xff] %vm711, %v668
  %734 = vst.msk [vmem:[%s4 + $0xb0] sm:$0xff] %vm711, %v669
  %735 = vst.msk [vmem:[%s4 + $0xb8] sm:$0xff] %vm711, %v670
  %736 = vst.msk [vmem:[%s4 + $0xc0] sm:$0xff] %vm711, %v671
  %737 = vst.msk [vmem:[%s4 + $0xc8] sm:$0xff] %vm711, %v672
  %738 = vst.msk [vmem:[%s4 + $0xd0] sm:$0xff] %vm711, %v673
  %739 = vst.msk [vmem:[%s4 + $0xd8] sm:$0xff] %vm711, %v674
  %740 = vst.msk [vmem:[%s4 + $0xe0] sm:$0xff] %vm711, %v675
  %741 = vst.msk [vmem:[%s4 + $0xe8] sm:$0xff] %vm711, %v676
  %742 = vst.msk [vmem:[%s4 + $0xf0] sm:$0xff] %vm711, %v677
  %743 = vst.msk [vmem:[%s4 + $0xf8] sm:$0xff] %vm711, %v678
  %744 = vst.msk [vmem:[%s4 + $0x100] sm:$0xff] %vm711, %v679
  %745 = vst.msk [vmem:[%s4 + $0x108] sm:$0xff] %vm711, %v680
  %746 = vst.msk [vmem:[%s4 + $0x110] sm:$0xff] %vm711, %v681
  %747 = vst.msk [vmem:[%s4 + $0x118] sm:$0xff] %vm711, %v682
  %748 = vst.msk [vmem:[%s4 + $0x120] sm:$0xff] %vm711, %v683
  %749 = vst.msk [vmem:[%s4 + $0x128] sm:$0xff] %vm711, %v684
  %750 = vst.msk [vmem:[%s4 + $0x130] sm:$0xff] %vm711, %v685
  %751 = vst.msk [vmem:[%s4 + $0x138] sm:$0xff] %vm711, %v686
  %752 = vst.msk [vmem:[%s4 + $0x140] sm:$0xff] %vm711, %v687
  %753 = vst.msk [vmem:[%s4 + $0x148] sm:$0xff] %vm711, %v688
  %754 = vst.msk [vmem:[%s4 + $0x150] sm:$0xff] %vm711, %v689
  %755 = vst.msk [vmem:[%s4 + $0x158] sm:$0xff] %vm711, %v690
  %756 = vst.msk [vmem:[%s4 + $0x160] sm:$0xff] %vm711, %v691
  %757 = vst.msk [vmem:[%s4 + $0x168] sm:$0xff] %vm711, %v692
  %758 = vst.msk [vmem:[%s4 + $0x170] sm:$0xff] %vm711, %v693
  %759 = vst.msk [vmem:[%s4 + $0x178] sm:$0xff] %vm711, %v694
  %760 = vst.msk [vmem:[%s4 + $0x180] sm:$0xff] %vm711, %v695
  %761 = vst.msk [vmem:[%s4 + $0x188] sm:$0xff] %vm711, %v696
  %762 = vst.msk [vmem:[%s4 + $0x190] sm:$0xff] %vm711, %v697
  %763 = vst.msk [vmem:[%s4 + $0x198] sm:$0xff] %vm711, %v698
  %764 = vst.msk [vmem:[%s4 + $0x1a0] sm:$0xff] %vm711, %v699
  %765 = vst.msk [vmem:[%s4 + $0x1a8] sm:$0xff] %vm711, %v700
  %766 = vst.msk [vmem:[%s4 + $0x1b0] sm:$0xff] %vm711, %v701
  %767 = vst.msk [vmem:[%s4 + $0x1b8] sm:$0xff] %vm711, %v702
  %768 = vst.msk [vmem:[%s4 + $0x1c0] sm:$0xff] %vm711, %v703
  %769 = vst.msk [vmem:[%s4 + $0x1c8] sm:$0xff] %vm711, %v704
  %770 = vst.msk [vmem:[%s4 + $0x1d0] sm:$0xff] %vm711, %v705
  %771 = vst.msk [vmem:[%s4 + $0x1d8] sm:$0xff] %vm711, %v706
  %772 = vst.msk [vmem:[%s4 + $0x1e0] sm:$0xff] %vm711, %v707
  %773 = vst.msk [vmem:[%s4 + $0x1e8] sm:$0xff] %vm711, %v708
  %774 = vst.msk [vmem:[%s4 + $0x1f0] sm:$0xff] %vm711, %v709
  %775 = vst.msk [vmem:[%s4 + $0x1f8] sm:$0xff] %vm711, %v710
  // Predicated region
  $region18: #{tpu_custom_call.1} parent=0 // pred_check
    _
  $region19: #{tpu_custom_call.1} parent=0 // pred_check_branch
    %777 = sbr.rel (0) target = $region21
  $region20: #{tpu_custom_call.1} parent=0 // pred_region
    _
  $region21: #{tpu_custom_call.1} parent=0 // pred_fallthru
    _
  // Predicated region
  $region22: #{tpu_custom_call.1} parent=0 // pred_check
    _
  $region23: #{tpu_custom_call.1} parent=0 // pred_check_branch
    %779 = sbr.rel (0) target = $region25
  $region24: #{tpu_custom_call.1} parent=0 // pred_region
    _
  $region25: #{tpu_custom_call.1} parent=0 // pred_fallthru
    _

</llo_original>
